<compile_context>
chip_gen: v6e
topology: v6e:2x2x1
jax: 0.10.0
libtpu: 0.0.40
codegen_flags: <defaults>
</compile_context>

<pallas_src>
import jax
import jax.numpy as jnp
import numpy as np
from jax.experimental import pallas as pl
from jax.experimental.pallas import tpu as pltpu

EPS = 1e-12


# --------------------------------------------------------------------------
# Kernel 1: one power iteration + sigma (runs once per forward, whole arrays
# in VMEM — shapes are tiny: [Cout, Cin*KH*KW]).
# --------------------------------------------------------------------------
def _power_iter_kernel(w_ref, u_ref, inv_sigma_ref, u_new_ref, v_new_ref):
    # w_ref: [N, K] flattened conv weight (PyTorch view(out_ch, -1) order)
    # u_ref: [1, N] left singular vector estimate
    w = w_ref[...]
    u = u_ref[...]

    # v = l2normalize(W^T u), computed as the row vector u @ W -> [1, K]
    wtu = jnp.dot(u, w, preferred_element_type=jnp.float32)
    v_nrm = jnp.sqrt(jnp.sum(wtu * wtu, keepdims=True))        # [1, 1]
    v_new = wtu / (v_nrm + EPS)

    # u = l2normalize(W v): contract the K axis of both operands -> [1, N]
    wv = jax.lax.dot_general(v_new, w, (((1,), (1,)), ((), ())),
                             preferred_element_type=jnp.float32)
    u_nrm = jnp.sqrt(jnp.sum(wv * wv, keepdims=True))           # [1, 1]
    u_new = wv / (u_nrm + EPS)

    # sigma = u_new . (W v_new)
    sigma = jnp.sum(u_new * wv, keepdims=True)                  # [1, 1]

    inv_sigma_ref[...] = 1.0 / sigma
    u_new_ref[...] = u_new
    v_new_ref[...] = v_new


# --------------------------------------------------------------------------
# Kernel 2: conv-as-shifted-matmuls over a lane-dense flattened layout.
# --------------------------------------------------------------------------
def _make_conv_kernel(offsets, tm):
    """offsets[t] = kh*Wp + kw (static python ints); tm = lane tile size."""

    def conv_kernel(xc_ref, xn_ref, w_ref, b_ref, o_ref, buf_ref):
        # xc_ref/xn_ref: [C, TM] current / next block of the padded, flattened
        #                activation (next block supplies the shift halo).
        # w_ref:         [KH*KW, N, C] spectrally-normalized weight taps.
        # b_ref:         [N, 1] bias.
        # o_ref:         [N, TM] extended-output block (lane-dense).
        # buf_ref:       [C, 2*TM] VMEM scratch holding [current | next].
        buf_ref[:, :tm] = xc_ref[...]
        buf_ref[:, tm:] = xn_ref[...]
        buf = buf_ref[...]                                      # [C, 2*TM]
        two_tm = 2 * tm

        # tap (kh=0, kw=0): offset 0, no shift needed.
        acc = jnp.dot(w_ref[0], buf[:, :tm],
                      preferred_element_type=jnp.float32)       # [N, TM]
        for t in range(1, len(offsets)):
            off = offsets[t]
            # window[:, j] = buf[:, j + off]  (wrap lands in discarded tail)
            win = pltpu.roll(buf, shift=two_tm - off, axis=1)[:, :tm]
            acc = acc + jnp.dot(w_ref[t], win,
                                preferred_element_type=jnp.float32)

        o_ref[...] = acc + b_ref[...]

    return conv_kernel


def _pick_tm(ptot):
    """Largest 128-multiple tile that still gives >=2 pipelined grid steps."""
    for cand in (1024, 512, 256, 128):
        if ptot >= 2 * cand:
            return cand
    return 128


def spectral_norm_conv2d(x, w_bar, bias, u, v, *, tm=None, return_state=False):
    """SpectralNorm(Conv2d(Cin, Cout, 3, stride=1, padding=1)).forward(x).

    `v` is accepted for parameter parity with the PyTorch module but (as in
    PyTorch, where it is overwritten before first use) it is never read, so it
    is not DMA'd into any kernel.
    """
    del v  # unused (overwritten by the first power iteration in PyTorch too)

    B, C, H, W = x.shape
    OC, IC, KH, KW = w_bar.shape
    assert C == IC and (KH, KW) == (3, 3)
    pad = 1
    Hp, Wp = H + 2 * pad, W + 2 * pad
    N, K = OC, IC * KH * KW

    # ---- power iteration + sigma: hoisted, runs once (tiny pallas_call) ----
    w_mat = w_bar.reshape(N, K)
    inv_sigma, u_new, v_new = pl.pallas_call(
        _power_iter_kernel,
        out_shape=(jax.ShapeDtypeStruct((1, 1), jnp.float32),
                   jax.ShapeDtypeStruct((1, N), jnp.float32),
                   jax.ShapeDtypeStruct((1, K), jnp.float32)),
    )(w_mat, u.reshape(1, N))

    # Scaled weight, laid out [KH*KW, N, C] so each tap w_conv[t] is a
    # ready-to-use [N, C] MXU operand (no in-kernel transpose).
    w_conv = (w_bar * inv_sigma[0, 0]).transpose(2, 3, 0, 1).reshape(KH * KW, N, C)

    # ---- flatten padded activation: [C, B*Hp*Wp], zero tail to a TM multiple
    x_pad = jnp.pad(x, ((0, 0), (0, 0), (pad, pad), (pad, pad)))
    x_flat = x_pad.transpose(1, 0, 2, 3).reshape(C, B * Hp * Wp)
    ptot = B * Hp * Wp
    if tm is None:
        tm = _pick_tm(ptot)
    p_full = pl.cdiv(ptot, tm) * tm
    x_flat = jnp.pad(x_flat, ((0, 0), (0, p_full - ptot)))
    ngrid = p_full // tm

    # shift for tap (kh, kw) in the flattened padded image
    offsets = tuple(kh * Wp + kw for kh in range(KH) for kw in range(KW))
    kernel = _make_conv_kernel(offsets, tm)

    cost = pl.CostEstimate(
        flops=2 * N * K * p_full,
        transcendentals=0,
        bytes_accessed=4 * (2 * C * p_full + N * p_full + KH * KW * N * C + N),
    )

    ext_out = pl.pallas_call(
        kernel,
        out_shape=jax.ShapeDtypeStruct((N, p_full), jnp.float32),
        grid_spec=pltpu.PrefetchScalarGridSpec(
            num_scalar_prefetch=0,
            grid=(ngrid,),
            in_specs=[
                # current block of the flattened activation
                pl.BlockSpec((C, tm), lambda i: (0, i)),
                # next block: supplies the (<= 2*Wp+2)-element shift halo.
                # Clamped at the last tile; the affected positions are all in
                # the discarded (padding / out-of-image) region.
                pl.BlockSpec((C, tm), lambda i: (0, jnp.minimum(i + 1, ngrid - 1))),
                # weight taps and bias: resident, same block every step
                pl.BlockSpec((KH * KW, N, C), lambda i: (0, 0, 0)),
                pl.BlockSpec((N, 1), lambda i: (0, 0)),
            ],
            out_specs=pl.BlockSpec((N, tm), lambda i: (0, i)),
            scratch_shapes=[pltpu.VMEM((C, 2 * tm), jnp.float32)],
        ),
        compiler_params=pltpu.CompilerParams(
            dimension_semantics=("parallel",),       # megacore on v7x
            vmem_limit_bytes=32 * 1024 * 1024,       # tiny footprint; safe on v5e/v6e/v7x
        ),
        cost_estimate=cost,
    )(x_flat, x_flat, w_conv, bias.reshape(N, 1))

    # Extended output (all padded positions) -> NCHW, keeping valid rows/cols.
    y = ext_out[:, :ptot].reshape(N, B, Hp, Wp)[:, :, :H, :W].transpose(1, 0, 2, 3)

    if return_state:
        # PyTorch mutates the u/v buffers in-place during forward; here the
        # updated estimates are returned functionally instead.
        return y, u_new.reshape(N), v_new.reshape(K)
    return y


# --------------------------------------------------------------------------
# Pure-JAX reference (matches the PyTorch SpectralNorm + Conv2d forward).
# --------------------------------------------------------------------------
def reference(x, w_bar, bias, u, v):
    OC = w_bar.shape[0]
    w_mat = w_bar.reshape(OC, -1)
    v_new = w_mat.T @ u
    v_new = v_new / (jnp.linalg.norm(v_new) + EPS)
    wv = w_mat @ v_new
    u_new = wv / (jnp.linalg.norm(wv) + EPS)
    sigma = u_new @ (w_mat @ v_new)
    w_norm = w_bar / sigma
    y = jax.lax.conv_general_dilated(
        x, w_norm, window_strides=(1, 1), padding=((1, 1), (1, 1)),
        dimension_numbers=("NCHW", "OIHW", "NCHW"))
    return y + bias.reshape(1, -1, 1, 1), u_new, v_new


if __name__ == "__main__":
    key = jax.random.PRNGKey(0)
    kx, kw, ku, kv, kb = jax.random.split(key, 5)

    B, Cin, Hs, Ws = 2, 4, 16, 16
    Cout, KH, KW = 8, 3, 3

    x = jax.random.normal(kx, (B, Cin, Hs, Ws), dtype=jnp.float32)
    # Conv2d weight -> becomes `weight_bar` in SpectralNorm._make_params
    w_bar = jax.random.normal(kw, (Cout, Cin, KH, KW), dtype=jnp.float32) * 0.1
    bias = jax.random.normal(kb, (Cout,), dtype=jnp.float32) * 0.1

    # u ~ N(0,1) of size height, v ~ N(0,1) of size width, l2-normalized
    u0 = jax.random.normal(ku, (Cout,), dtype=jnp.float32)
    v0 = jax.random.normal(kv, (Cin * KH * KW,), dtype=jnp.float32)
    u0 = u0 / (jnp.linalg.norm(u0) + EPS)
    v0 = v0 / (jnp.linalg.norm(v0) + EPS)

    out, u_new, v_new = spectral_norm_conv2d(x, w_bar, bias, u0, v0,
                                             return_state=True)
    out = jax.block_until_ready(out)

    ref_y, ref_u, ref_v = reference(x, w_bar, bias, u0, v0)
    ref_y = jax.block_until_ready(ref_y)

    assert out.shape == (B, Cout, Hs, Ws)
    assert np.allclose(np.asarray(out), np.asarray(ref_y), rtol=1e-4, atol=1e-4)
    assert np.allclose(np.asarray(u_new), np.asarray(ref_u), rtol=1e-4, atol=1e-4)
    assert np.allclose(np.asarray(v_new), np.asarray(ref_v), rtol=1e-4, atol=1e-4)

    print("KERNEL_OK")
</pallas_src>

<mosaic_0001>
module attributes {stable_mosaic.version = 11 : i64} {
  func.func @_power_iter_kernel(%arg0: memref<8x36xf32, #tpu.memory_space<vmem>>, %arg1: memref<1x8xf32, #tpu.memory_space<vmem>>, %arg2: memref<1x1xf32, #tpu.memory_space<vmem>>, %arg3: memref<1x8xf32, #tpu.memory_space<vmem>>, %arg4: memref<1x36xf32, #tpu.memory_space<vmem>>) attributes {dimension_semantics = [], scalar_prefetch = 0 : i64, scratch_operands = 0 : i64, tpu.core_type = #tpu.core_type<tc>} {
    %c0 = arith.constant 0 : index
    %c0_0 = arith.constant 0 : index
    %0 = vector.load %arg0[%c0, %c0_0] : memref<8x36xf32, #tpu.memory_space<vmem>>, vector<8x36xf32>
    %c0_1 = arith.constant 0 : index
    %c0_2 = arith.constant 0 : index
    %1 = vector.load %arg1[%c0_1, %c0_2] : memref<1x8xf32, #tpu.memory_space<vmem>>, vector<1x8xf32>
    %cst = arith.constant dense<0.000000e+00> : vector<1x36xf32>
    %2 = tpu.matmul %1, %0, %cst {dimension_numbers = #tpu.dot_dimension_numbers<[1], [0], [0], [1], [0, 0, 1, 1], [], []>} : vector<1x8xf32>, vector<8x36xf32>, vector<1x36xf32> -> vector<1x36xf32>
    %3 = arith.mulf %2, %2 : vector<1x36xf32>
    %4 = vector.shape_cast %3 : vector<1x36xf32> to vector<1x1x36xf32>
    %cst_3 = arith.constant dense<0.000000e+00> : vector<1xf32>
    %5 = vector.multi_reduction <add>, %4, %cst_3 [1, 2] : vector<1x1x36xf32> to vector<1xf32>
    %6 = vector.shape_cast %5 : vector<1xf32> to vector<1x1x1xf32>
    %7 = vector.extract %6[0, 0, 0] : f32 from vector<1x1x1xf32>
    %8 = vector.broadcast %7 : f32 to vector<1x1xf32>
    %9 = math.sqrt %8 : vector<1x1xf32>
    %cst_4 = arith.constant 9.99999996E-13 : f32
    %10 = vector.broadcast %cst_4 : f32 to vector<1x1xf32>
    %11 = arith.addf %9, %10 : vector<1x1xf32>
    %12 = vector.broadcast %11 : vector<1x1xf32> to vector<1x36xf32>
    %13 = arith.divf %2, %12 : vector<1x36xf32>
    %cst_5 = arith.constant dense<0.000000e+00> : vector<1x8xf32>
    %14 = tpu.matmul %13, %0, %cst_5 {dimension_numbers = #tpu.dot_dimension_numbers<[1], [1], [0], [0], [0, 0, 1, 0], [], []>} : vector<1x36xf32>, vector<8x36xf32>, vector<1x8xf32> -> vector<1x8xf32>
    %15 = arith.mulf %14, %14 : vector<1x8xf32>
    %16 = vector.shape_cast %15 : vector<1x8xf32> to vector<1x1x8xf32>
    %cst_6 = arith.constant dense<0.000000e+00> : vector<1xf32>
    %17 = vector.multi_reduction <add>, %16, %cst_6 [1, 2] : vector<1x1x8xf32> to vector<1xf32>
    %18 = vector.shape_cast %17 : vector<1xf32> to vector<1x1x1xf32>
    %19 = vector.extract %18[0, 0, 0] : f32 from vector<1x1x1xf32>
    %20 = vector.broadcast %19 : f32 to vector<1x1xf32>
    %21 = math.sqrt %20 : vector<1x1xf32>
    %cst_7 = arith.constant 9.99999996E-13 : f32
    %22 = vector.broadcast %cst_7 : f32 to vector<1x1xf32>
    %23 = arith.addf %21, %22 : vector<1x1xf32>
    %24 = vector.broadcast %23 : vector<1x1xf32> to vector<1x8xf32>
    %25 = arith.divf %14, %24 : vector<1x8xf32>
    %26 = arith.mulf %25, %14 : vector<1x8xf32>
    %27 = vector.shape_cast %26 : vector<1x8xf32> to vector<1x1x8xf32>
    %cst_8 = arith.constant dense<0.000000e+00> : vector<1xf32>
    %28 = vector.multi_reduction <add>, %27, %cst_8 [1, 2] : vector<1x1x8xf32> to vector<1xf32>
    %29 = vector.shape_cast %28 : vector<1xf32> to vector<1x1x1xf32>
    %30 = vector.extract %29[0, 0, 0] : f32 from vector<1x1x1xf32>
    %31 = vector.broadcast %30 : f32 to vector<1x1xf32>
    %cst_9 = arith.constant 1.000000e+00 : f32
    %32 = vector.broadcast %cst_9 : f32 to vector<1x1xf32>
    %33 = arith.divf %32, %31 : vector<1x1xf32>
    %c0_10 = arith.constant 0 : index
    %c0_11 = arith.constant 0 : index
    %34 = vector.load %arg2[%c0_10, %c0_11] : memref<1x1xf32, #tpu.memory_space<vmem>>, vector<1x1xf32>
    tpu.vector_store %arg2[%c0_10, %c0_11], %33 {strides = array<i32>} : memref<1x1xf32, #tpu.memory_space<vmem>>, vector<1x1xf32>,
    %c0_12 = arith.constant 0 : index
    %c0_13 = arith.constant 0 : index
    %35 = vector.load %arg3[%c0_12, %c0_13] : memref<1x8xf32, #tpu.memory_space<vmem>>, vector<1x8xf32>
    tpu.vector_store %arg3[%c0_12, %c0_13], %25 {strides = array<i32>} : memref<1x8xf32, #tpu.memory_space<vmem>>, vector<1x8xf32>,
    %c0_14 = arith.constant 0 : index
    %c0_15 = arith.constant 0 : index
    %36 = vector.load %arg4[%c0_14, %c0_15] : memref<1x36xf32, #tpu.memory_space<vmem>>, vector<1x36xf32>
    tpu.vector_store %arg4[%c0_14, %c0_15], %13 {strides = array<i32>} : memref<1x36xf32, #tpu.memory_space<vmem>>, vector<1x36xf32>,
    return
  }
}

</mosaic_0001>

<llo_original>
// kernel: tpu_custom_call.1
$region0: #{tpu_custom_call.1}
  #allocation0 [shape = 'u32[]', space=smem, size = 0x4, offset = 0x4, fixed_abs, tag = 'smem constant byte address 0x4 - core index']
  #allocation1 [shape = 'u32[144,128]{1,0:T(1,128)}', space=vmem, size = 0x12000, scoped, tag = 'internal scratch']
  %s0 = inlined_call_operand.hbm [shape: f32[8,36], index: 0, kind: input, shape index: {}]
  %s1 = inlined_call_operand.vmem [shape: f32[1,8], index: 1, kind: input, shape index: {}]
  %s2 = inlined_call_operand.hbm [shape: f32[1,1], index: 2, kind: output, shape index: {0}]
  %s3 = inlined_call_operand.hbm [shape: f32[1,8], index: 3, kind: output, shape index: {1}]
  %s4 = inlined_call_operand.hbm [shape: f32[1,36], index: 4, kind: output, shape index: {2}]
  %5 = xla_tuple %s2, %s3, %s4
  %s6 = sld [smem:[#allocation0]]
  $region38: #{tpu_custom_call.1} parent=0
    _
  %s8 = ssub.s32 1, %s6
  %s9 = scalar_select 0, %s8, %s6
  $region1: #{tpu_custom_call.1} parent=0
    #allocation2 [shape = 'u8[4096]{0}', space=vmem, size = 0x1000, scoped, tag = 'input window, operand 0, single buffered']
    #allocation3 [shape = 's32[1]{0}', space=sflag, size = 0x4, scoped, tag = 'scoped memory for tpu_custom_call.1']
    #allocation4 [shape = 's32[1]{0}', space=sflag, size = 0x4, scoped, tag = 'scoped memory for tpu_custom_call.1']
    #allocation5 [shape = 'u8[512]{0}', space=vmem, size = 0x400, scoped, tag = 'output window, operand 0, single buffered']
    #allocation6 [shape = 'u8[512]{0}', space=vmem, size = 0x400, scoped, tag = 'output window, operand 1, single buffered']
    #allocation7 [shape = 's32[1]{0}', space=sflag, size = 0x4, scoped, tag = 'scoped memory for tpu_custom_call.1']
    #allocation8 [shape = 'u8[512]{0}', space=vmem, size = 0x400, scoped, tag = 'output window, operand 2, single buffered']
    %10 = vsyncpa [#allocation3], 0
    %11 = vsyncpa [#allocation4], 0
    %12 = vsyncpa [#allocation7], 0
    // Predicated region
    $region2: #{tpu_custom_call.1} parent=1 // pred_check
      _
    $region3: #{tpu_custom_call.1} parent=1 // pred_check_branch
      %14 = sbr.rel (0) target = $region5
    $region4: #{tpu_custom_call.1} parent=1 // pred_region
      %s16 = ssub.s32 128, 128
      %17 = vsyncadd [#allocation3], %s16
      %s19 = sshll.u32 [#allocation2], 4
      %s20 = int_to_ptr.vmem [resolvable:$true] %s19
      %22 = dma.hbm_to_vmem [thread:$0]  %s0, 128, %s20, [#allocation3]
    $region5: #{tpu_custom_call.1} parent=1 // pred_fallthru
      _
    // Predicated region
    $region6: #{tpu_custom_call.1} parent=1 // pred_check
      _
    $region7: #{tpu_custom_call.1} parent=1 // pred_check_branch
      %24 = sbr.rel (0) target = $region9
    $region8: #{tpu_custom_call.1} parent=1 // pred_region
      _
    $region9: #{tpu_custom_call.1} parent=1 // pred_fallthru
      _
    // Predicated region
    $region10: #{tpu_custom_call.1} parent=1 // pred_check
      _
    $region11: #{tpu_custom_call.1} parent=1 // pred_check_branch
      %26 = sbr.rel (0) target = $region13
    $region12: #{tpu_custom_call.1} parent=1 // pred_region
      %27 = dma.done [#allocation3], 128
    $region13: #{tpu_custom_call.1} parent=1 // pred_fallthru
      _
    %v28 = vld [vmem:[#allocation2] sm:$0xff]
    %v29 = vld [vmem:[%s1] sm:$0x1]
    %vm30 = vcmask 64512
    %v32 = vsel %vm30, %v29, 0
    %34 = vmatprep.subr.mxu0 0.0
    %35 = vmatpush1.msra.mxu0 0.0
    %36 = vmatprep.subr.mxu0 0.0
    %37 = vmatpush1.msra.mxu0 0.0
    %38 = vmatprep.subr.mxu0 0.0
    %39 = vmatpush1.msra.mxu0 0.0
    %40 = vmatprep.subr.mxu0 0.0
    %41 = vmatpush1.msra.mxu0 0.0
    %42 = vmatprep.subr.mxu0 0.0
    %43 = vmatpush1.msra.mxu0 0.0
    %44 = vmatprep.subr.mxu0 0.0
    %45 = vmatpush1.msra.mxu0 0.0
    %46 = vmatprep.subr.mxu0 0.0
    %47 = vmatpush1.msra.mxu0 0.0
    %48 = vmatprep.subr.mxu0 0.0
    %49 = vmatpush1.msra.mxu0 0.0
    %50 = vmatprep.subr.mxu0 0.0
    %51 = vmatpush1.msra.mxu0 0.0
    %52 = vmatprep.subr.mxu0 0.0
    %53 = vmatpush1.msra.mxu0 0.0
    %54 = vmatprep.subr.mxu0 0.0
    %55 = vmatpush1.msra.mxu0 0.0
    %56 = vmatprep.subr.mxu0 0.0
    %57 = vmatpush1.msra.mxu0 0.0
    %58 = vmatprep.subr.mxu0 0.0
    %59 = vmatpush1.msra.mxu0 0.0
    %60 = vmatprep.subr.mxu0 0.0
    %61 = vmatpush1.msra.mxu0 0.0
    %62 = vmatprep.subr.mxu0 0.0
    %63 = vmatpush1.msra.mxu0 0.0
    %64 = vmatprep.subr.mxu0 0.0
    %65 = vmatpush1.msra.mxu0 %v28
    %66 = vmatprep.subr.mxu0 0.0
    %67 = vmatpush2.msra.mxu0 0.0
    %68 = vmatprep.subr.mxu0 0.0
    %69 = vmatpush2.msra.mxu0 0.0
    %70 = vmatprep.subr.mxu0 0.0
    %71 = vmatpush2.msra.mxu0 0.0
    %72 = vmatprep.subr.mxu0 0.0
    %73 = vmatpush2.msra.mxu0 0.0
    %74 = vmatprep.subr.mxu0 0.0
    %75 = vmatpush2.msra.mxu0 0.0
    %76 = vmatprep.subr.mxu0 0.0
    %77 = vmatpush2.msra.mxu0 0.0
    %78 = vmatprep.subr.mxu0 0.0
    %79 = vmatpush2.msra.mxu0 0.0
    %80 = vmatprep.subr.mxu0 0.0
    %81 = vmatpush2.msra.mxu0 0.0
    %82 = vmatprep.subr.mxu0 0.0
    %83 = vmatpush2.msra.mxu0 0.0
    %84 = vmatprep.subr.mxu0 0.0
    %85 = vmatpush2.msra.mxu0 0.0
    %86 = vmatprep.subr.mxu0 0.0
    %87 = vmatpush2.msra.mxu0 0.0
    %88 = vmatprep.subr.mxu0 0.0
    %89 = vmatpush2.msra.mxu0 0.0
    %90 = vmatprep.subr.mxu0 0.0
    %91 = vmatpush2.msra.mxu0 0.0
    %92 = vmatprep.subr.mxu0 0.0
    %93 = vmatpush2.msra.mxu0 0.0
    %94 = vmatprep.subr.mxu0 0.0
    %95 = vmatpush2.msra.mxu0 0.0
    %96 = vmatprep.subr.mxu0 0.0
    %97 = vmatpush2.msra.mxu0 0.0
    %98 = vmatprep.mubr.f32.mxu0 0.0
    %99 = vmatmul.mubr.f32.gmra.mxu0 %v32
    %v100 = vpop.f32.mrf.mxu0
    %v101 = vadd.f32 0.0, %v100
    %v102 = vpop.f32.mrf.mxu0
    %103 = vdwg.mxu0
    %v104 = vmul.f32 %v101, %v101
    %vm105 = vcmask 286720
    %v106 = vsel %vm105, %v104, 0.0
    %107 = vadd.xlane.f32.xlu0 %v106
    %v108 = vpop.xlane.xlu0 %107
    %v109 = vrot.slane %v108, 4
    %v110 = vadd.f32 %v108, %v109
    %v111 = vrot.slane %v110, 2
    %v112 = vadd.f32 %v110, %v111
    %v113 = vrot.slane %v112, 1
    %v114 = vadd.f32 %v112, %v113
    %s115 = vtos %v114
    %v116 = vstv %s115
    %v117 = vrsqrt.pop %v116
    %v118 = vmul.f32 %v116, %v117
    %vm119 = vcmp.eq.f32.partialorder %v116, inf
    %v120 = vsel %vm119, %v116, %v118
    %vm121 = vcmp.eq.f32.partialorder %v116, 0.0
    %v122 = vand.u32 %v116, 2147483648
    %v123 = vsel %vm121, %v122, %v120
    %v124 = vadd.f32 %v123, 1e-12
    %v125 = vrcp.pop %v124
    %v126 = vmul.f32 %v101, %v125
    %vm127 = vcmask 293888
    %v129 = vsel %vm127, %v126, 0
    %v132 = vsel %vm127, %v28, 0
    %134 = vmatprep.subr.mxu0 0.0
    %135 = vmatpush1.xpose.msra.mxu0 0.0
    %136 = vmatprep.subr.mxu0 0.0
    %137 = vmatpush1.xpose.msra.mxu0 0.0
    %138 = vmatprep.subr.mxu0 0.0
    %139 = vmatpush1.xpose.msra.mxu0 0.0
    %140 = vmatprep.subr.mxu0 0.0
    %141 = vmatpush1.xpose.msra.mxu0 0.0
    %142 = vmatprep.subr.mxu0 0.0
    %143 = vmatpush1.xpose.msra.mxu0 0.0
    %144 = vmatprep.subr.mxu0 0.0
    %145 = vmatpush1.xpose.msra.mxu0 0.0
    %146 = vmatprep.subr.mxu0 0.0
    %147 = vmatpush1.xpose.msra.mxu0 0.0
    %148 = vmatprep.subr.mxu0 0.0
    %149 = vmatpush1.xpose.msra.mxu0 0.0
    %150 = vmatprep.subr.mxu0 0.0
    %151 = vmatpush1.xpose.msra.mxu0 0.0
    %152 = vmatprep.subr.mxu0 0.0
    %153 = vmatpush1.xpose.msra.mxu0 0.0
    %154 = vmatprep.subr.mxu0 0.0
    %155 = vmatpush1.xpose.msra.mxu0 0.0
    %156 = vmatprep.subr.mxu0 0.0
    %157 = vmatpush1.xpose.msra.mxu0 0.0
    %158 = vmatprep.subr.mxu0 0.0
    %159 = vmatpush1.xpose.msra.mxu0 0.0
    %160 = vmatprep.subr.mxu0 0.0
    %161 = vmatpush1.xpose.msra.mxu0 0.0
    %162 = vmatprep.subr.mxu0 0.0
    %163 = vmatpush1.xpose.msra.mxu0 0.0
    %164 = vmatprep.subr.mxu0 0.0
    %165 = vmatpush1.xpose.msra.mxu0 %v132
    %166 = vmatprep.subr.mxu0 0.0
    %167 = vmatpush2.xpose.msra.mxu0 0.0
    %168 = vmatprep.subr.mxu0 0.0
    %169 = vmatpush2.xpose.msra.mxu0 0.0
    %170 = vmatprep.subr.mxu0 0.0
    %171 = vmatpush2.xpose.msra.mxu0 0.0
    %172 = vmatprep.subr.mxu0 0.0
    %173 = vmatpush2.xpose.msra.mxu0 0.0
    %174 = vmatprep.subr.mxu0 0.0
    %175 = vmatpush2.xpose.msra.mxu0 0.0
    %176 = vmatprep.subr.mxu0 0.0
    %177 = vmatpush2.xpose.msra.mxu0 0.0
    %178 = vmatprep.subr.mxu0 0.0
    %179 = vmatpush2.xpose.msra.mxu0 0.0
    %180 = vmatprep.subr.mxu0 0.0
    %181 = vmatpush2.xpose.msra.mxu0 0.0
    %182 = vmatprep.subr.mxu0 0.0
    %183 = vmatpush2.xpose.msra.mxu0 0.0
    %184 = vmatprep.subr.mxu0 0.0
    %185 = vmatpush2.xpose.msra.mxu0 0.0
    %186 = vmatprep.subr.mxu0 0.0
    %187 = vmatpush2.xpose.msra.mxu0 0.0
    %188 = vmatprep.subr.mxu0 0.0
    %189 = vmatpush2.xpose.msra.mxu0 0.0
    %190 = vmatprep.subr.mxu0 0.0
    %191 = vmatpush2.xpose.msra.mxu0 0.0
    %192 = vmatprep.subr.mxu0 0.0
    %193 = vmatpush2.xpose.msra.mxu0 0.0
    %194 = vmatprep.subr.mxu0 0.0
    %195 = vmatpush2.xpose.msra.mxu0 0.0
    %196 = vmatprep.subr.mxu0 0.0
    %197 = vmatpush2.xpose.msra.mxu0 0.0
    %198 = vmatprep.mubr.f32.mxu0 0.0
    %199 = vmatmul.mubr.f32.gmra.mxu0 %v129
    %v200 = vpop.f32.mrf.mxu0
    %v201 = vadd.f32 0.0, %v200
    %v202 = vpop.f32.mrf.mxu0
    %203 = vdwg.mxu0
    %v204 = vmul.f32 %v201, %v201
    %vm205 = vcmask 57344
    %v206 = vsel %vm205, %v204, 0.0
    %207 = vadd.xlane.f32.xlu0 %v206
    %v208 = vpop.xlane.xlu0 %207
    %v209 = vrot.slane %v208, 4
    %v210 = vadd.f32 %v208, %v209
    %v211 = vrot.slane %v210, 2
    %v212 = vadd.f32 %v210, %v211
    %v213 = vrot.slane %v212, 1
    %v214 = vadd.f32 %v212, %v213
    %s215 = vtos %v214
    %v216 = vstv %s215
    %v217 = vrsqrt.pop %v216
    %v218 = vmul.f32 %v216, %v217
    %vm219 = vcmp.eq.f32.partialorder %v216, inf
    %v220 = vsel %vm219, %v216, %v218
    %vm221 = vcmp.eq.f32.partialorder %v216, 0.0
    %v222 = vand.u32 %v216, 2147483648
    %v223 = vsel %vm221, %v222, %v220
    %v224 = vadd.f32 %v223, 1e-12
    %v225 = vrcp.pop %v224
    %v226 = vmul.f32 %v201, %v225
    %v227 = vmul.f32 %v226, %v201
    %v228 = vsel %vm205, %v227, 0.0
    %229 = vadd.xlane.f32.xlu0 %v228
    %v230 = vpop.xlane.xlu0 %229
    %v231 = vrot.slane %v230, 4
    %v232 = vadd.f32 %v230, %v231
    %v233 = vrot.slane %v232, 2
    %v234 = vadd.f32 %v232, %v233
    %v235 = vrot.slane %v234, 1
    %v236 = vadd.f32 %v234, %v235
    %s237 = vtos %v236
    %v238 = vstv %s237
    %v239 = vrcp.pop %v238
    %v240 = vmul.f32 1.0, %v239
    %vm241 = vcmask 0
    %242 = vst.msk [vmem:[#allocation5] sm:$0x1] %vm241, %v240
    %243 = vst.msk [vmem:[#allocation6] sm:$0x1] %vm205, %v226
    %244 = vst.msk [vmem:[#allocation8] sm:$0x1] %vm105, %v126
    // Predicated region
    $region14: #{tpu_custom_call.1} parent=1 // pred_check
      _
    $region15: #{tpu_custom_call.1} parent=1 // pred_check_branch
      %246 = sbr.rel (0) target = $region17
    $region16: #{tpu_custom_call.1} parent=1 // pred_region
      %s248 = ssub.s32 16, 16
      %249 = vsyncadd [#allocation4], %s248
      %s251 = sshll.u32 [#allocation5], 4
      %s252 = int_to_ptr.vmem [resolvable:$true] %s251
      %254 = dma.vmem_to_hbm [thread:$0]  %s252, 16, %s2, [#allocation4]
    $region17: #{tpu_custom_call.1} parent=1 // pred_fallthru
      _
    // Predicated region
    $region18: #{tpu_custom_call.1} parent=1 // pred_check
      _
    $region19: #{tpu_custom_call.1} parent=1 // pred_check_branch
      %256 = sbr.rel (0) target = $region21
    $region20: #{tpu_custom_call.1} parent=1 // pred_region
      %s258 = ssub.s32 16, 16
      %259 = vsyncadd [#allocation7], %s258
      %s261 = sshll.u32 [#allocation6], 4
      %s262 = int_to_ptr.vmem [resolvable:$true] %s261
      %264 = dma.vmem_to_hbm [thread:$0]  %s262, 16, %s3, [#allocation7]
    $region21: #{tpu_custom_call.1} parent=1 // pred_fallthru
      _
    // Predicated region
    $region22: #{tpu_custom_call.1} parent=1 // pred_check
      _
    $region23: #{tpu_custom_call.1} parent=1 // pred_check_branch
      %266 = sbr.rel (0) target = $region25
    $region24: #{tpu_custom_call.1} parent=1 // pred_region
      %s268 = ssub.s32 16, 16
      %269 = vsyncadd [#allocation7], %s268
      %s271 = sshll.u32 [#allocation8], 4
      %s272 = int_to_ptr.vmem [resolvable:$true] %s271
      %274 = dma.vmem_to_hbm [thread:$0]  %s272, 16, %s4, [#allocation7]
    $region25: #{tpu_custom_call.1} parent=1 // pred_fallthru
      _
    // Predicated region
    $region26: #{tpu_custom_call.1} parent=1 // pred_check
      _
    $region27: #{tpu_custom_call.1} parent=1 // pred_check_branch
      %276 = sbr.rel (0) target = $region29
    $region28: #{tpu_custom_call.1} parent=1 // pred_region
      %277 = dma.done [#allocation4], 16
    $region29: #{tpu_custom_call.1} parent=1 // pred_fallthru
      _
    // Predicated region
    $region30: #{tpu_custom_call.1} parent=1 // pred_check
      _
    $region31: #{tpu_custom_call.1} parent=1 // pred_check_branch
      %279 = sbr.rel (0) target = $region33
    $region32: #{tpu_custom_call.1} parent=1 // pred_region
      %280 = dma.done [#allocation7], 16
    $region33: #{tpu_custom_call.1} parent=1 // pred_fallthru
      _
    // Predicated region
    $region34: #{tpu_custom_call.1} parent=1 // pred_check
      _
    $region35: #{tpu_custom_call.1} parent=1 // pred_check_branch
      %282 = sbr.rel (0) target = $region37
    $region36: #{tpu_custom_call.1} parent=1 // pred_region
      %283 = dma.done [#allocation7], 16
    $region37: #{tpu_custom_call.1} parent=1 // pred_fallthru
      _
    %284 = vsyncpa [#allocation3], 1
    %285 = vsyncpa [#allocation4], 1
    %286 = vsyncpa [#allocation7], 1

</llo_original>
